<compile_context>
chip_gen: v7x
topology: tpu7x:2x2x1
jax: 0.10.0
libtpu: 0.0.40
codegen_flags: <defaults>
</compile_context>

<pallas_src>
import jax
import jax.numpy as jnp
from jax.experimental import pallas as pl
from jax.experimental.pallas import tpu as pltpu

_LANE = 128


def _activation_kernel(x_ref, o_ref):
    x = x_ref[...]
    # min(x + 1, -x + 1), then Threshold(0, 0).  The explicit `where` (rather
    # than maximum(1-|x|, 0)) keeps PyTorch's NaN behaviour: NaN > 0 is False -> 0.
    m = jnp.minimum(x + 1.0, 1.0 - x)
    o_ref[...] = jnp.where(m > 0, m, 0.0).astype(o_ref.dtype)


def _activation_jnp(x):
    # Same math for tiny inputs / the <128-element tail epilogue.
    m = jnp.minimum(x + 1.0, 1.0 - x)
    return jnp.where(m > 0, m, 0.0).astype(x.dtype)


def _round_up(n, m):
    return ((n + m - 1) // m) * m


def _cdiv(a, b):
    return -(-a // b)


def _tpu_profile(itemsize):
    """Generation-tuned (block_bytes, vmem_limit_bytes, dim_semantics, two_cores)."""
    try:
        kind = jax.devices()[0].device_kind.lower()
    except Exception:  # pragma: no cover - defensive
        kind = ""
    if "v7" in kind or "tpu7" in kind:
        # v7x: 64 MiB physical / 32 MiB scoped VMEM, 2 TensorCores per chip.
        # 4 double-buffered blocks x 6 MiB = 24 MiB, inside the scoped budget.
        return 6 * 1024 * 1024, 32 * 1024 * 1024, (pltpu.CORE_PARALLEL,), True
    if "v6" in kind or "trillium" in kind:
        # v6e: 128 MiB physical VMEM, ~1.4 TB/s HBM -> 4 MiB blocks (~86% roofline).
        return 4 * 1024 * 1024, 64 * 1024 * 1024, ("parallel",), False
    if "v5" in kind:
        # v5e: 16 MiB scoped default -> 2 MiB blocks (8 MiB buffered) + raised limit.
        return 2 * 1024 * 1024, 32 * 1024 * 1024, ("parallel",), False
    # Unknown generation: conservative 1 MiB blocks, default VMEM limit.
    return 1 * 1024 * 1024, None, ("parallel",), False


def _choose_block_rows(rows, max_block_rows, pipe_min_rows, pack, two_cores):
    """Pick (block_rows, num_steps): largest block in the VMEM budget, with
    enough grid steps for DMA/compute pipelining and (on v7x) both cores fed."""
    if rows <= max_block_rows:
        block = rows                      # full extent: no alignment constraint
    else:
        block = max_block_rows            # multiple of `pack`
    steps = _cdiv(rows, block)

    # Once DMA time dominates the fixed per-step overhead, make sure there are
    # >=3 steps (>=4 on v7x) so fetch(i+1)/compute(i)/writeback(i-1) overlap.
    target = 4 if two_cores else 3
    if rows >= target * pipe_min_rows and steps < target:
        block = max(pack, _round_up(_cdiv(rows, target), pack))
        steps = _cdiv(rows, block)
    elif two_cores and steps < 2 and rows >= 2 * pack:
        # Never leave a whole TensorCore idle on v7x for non-tiny inputs.
        block = max(pack, _round_up(_cdiv(rows, 2), pack))
        steps = _cdiv(rows, block)

    # v7x: prefer an even step count so the core-parallel split is balanced.
    if two_cores and steps > 1 and steps % 2 == 1:
        cand = max(pack, _round_up(_cdiv(rows, steps + 1), pack))
        if _cdiv(rows, cand) % 2 == 0:
            block = cand
            steps = _cdiv(rows, cand)
    return block, steps


def activation(x: jax.Array) -> jax.Array:
    """Elementwise Threshold(0,0)(min(x+1, 1-x)), matching the PyTorch module.

    Intended for floating-point activations (f32/bf16); integer inputs would
    need an explicit cast before use.
    """
    orig_shape = x.shape
    dtype = x.dtype
    itemsize = jnp.dtype(dtype).itemsize

    total = x.size
    rem = total % _LANE
    main = total - rem
    rows = main // _LANE

    # Tiny (< one 128-lane row) or empty inputs: not worth a kernel launch.
    if rows == 0:
        return _activation_jnp(x)

    flat = jnp.reshape(x, (-1,))            # contiguous reshape: free
    if rem:
        # Kernel covers the multiple-of-128 prefix; the <=127-element tail is
        # handled by a tiny XLA epilogue (no full-array pad/slice round trip).
        head = jax.lax.slice(flat, (0,), (main,))
        tail = jax.lax.slice(flat, (main,), (total,))
    else:
        head, tail = flat, None
    x2d = jnp.reshape(head, (rows, _LANE))

    block_bytes, vmem_limit, dim_sem, two_cores = _tpu_profile(itemsize)
    # Sublane packing granularity: 8 rows for 32-bit, 16 for bf16, 32 for 8-bit.
    pack = 8 * max(1, 4 // itemsize)
    # Keep block *bytes* constant across dtypes; round to the packing multiple.
    max_block_rows = max(pack, (block_bytes // (_LANE * itemsize)) // pack * pack)
    # ~256 KiB: below this a block's DMA is cheaper than the per-step overhead.
    pipe_min_rows = max(pack, _round_up((256 * 1024) // (_LANE * itemsize), pack))

    block_rows, steps = _choose_block_rows(
        rows, max_block_rows, pipe_min_rows, pack, two_cores)

    cp_kwargs = dict(dimension_semantics=dim_sem)
    if vmem_limit is not None:
        cp_kwargs["vmem_limit_bytes"] = vmem_limit

    out2d = pl.pallas_call(
        _activation_kernel,
        out_shape=jax.ShapeDtypeStruct((rows, _LANE), dtype),
        grid_spec=pltpu.PrefetchScalarGridSpec(
            num_scalar_prefetch=0,
            grid=(steps,),
            in_specs=[pl.BlockSpec((block_rows, _LANE), lambda i: (i, 0))],
            out_specs=pl.BlockSpec((block_rows, _LANE), lambda i: (i, 0)),
        ),
        compiler_params=pltpu.CompilerParams(**cp_kwargs),
        cost_estimate=pl.CostEstimate(
            flops=3 * main,
            transcendentals=0,
            bytes_accessed=2 * main * itemsize,
        ),
    )(x2d)

    out_flat = jnp.reshape(out2d, (-1,))
    if rem:
        out_flat = jnp.concatenate([out_flat, _activation_jnp(tail)])
    return jnp.reshape(out_flat, orig_shape)


if __name__ == "__main__":
    key = jax.random.PRNGKey(0)
    # NCHW input consistent with an MNIST-style conv net: batch=2, channels=4, 16x16.
    x = jax.random.normal(key, (2, 4, 16, 16), dtype=jnp.float32) * 2.0

    out = jax.block_until_ready(activation(x))
    m = jnp.minimum(x + 1.0, 1.0 - x)
    ref = jnp.where(m > 0, m, 0.0)
    assert out.shape == x.shape and out.dtype == x.dtype
    assert jnp.allclose(out, ref, atol=1e-6)

    # Non-multiple-of-128 total size (exercises the tail epilogue) + NaN parity:
    # torch Threshold(0,0) maps NaN to 0, and so does the kernel's where().
    x2 = jax.random.normal(jax.random.PRNGKey(1), (2, 3, 50, 3), dtype=jnp.float32)
    x2 = x2.at[0, 0, 0, 0].set(jnp.nan)
    out2 = jax.block_until_ready(activation(x2))
    m2 = jnp.minimum(x2 + 1.0, 1.0 - x2)
    ref2 = jnp.where(m2 > 0, m2, 0.0)
    assert jnp.allclose(out2, ref2, atol=1e-6)
    assert bool(out2[0, 0, 0, 0] == 0.0)

    print("KERNEL_OK")
</pallas_src>

<mosaic_0001>
module attributes {stable_mosaic.version = 11 : i64} {
  func.func @_activation_kernel(%arg0: i32, %arg1: memref<16x128xf32, #tpu.memory_space<vmem>>, %arg2: memref<16x128xf32, #tpu.memory_space<vmem>>) attributes {dimension_semantics = [#tpu.dimension_semantics<parallel>], iteration_bounds = array<i64: 1>, scalar_prefetch = 0 : i64, scratch_operands = 0 : i64, tpu.core_type = #tpu.core_type<tc>, window_params = [{transform_indices = @transform_0, window_bounds = array<i64: 16, 128>}, {transform_indices = @transform_1, window_bounds = array<i64: 16, 128>}]} {
    %c0 = arith.constant 0 : index
    %c0_0 = arith.constant 0 : index
    %0 = vector.load %arg1[%c0, %c0_0] : memref<16x128xf32, #tpu.memory_space<vmem>>, vector<16x128xf32>
    %cst = arith.constant 1.000000e+00 : f32
    %1 = vector.broadcast %cst : f32 to vector<16x128xf32>
    %2 = arith.addf %0, %1 : vector<16x128xf32>
    %cst_1 = arith.constant 1.000000e+00 : f32
    %3 = vector.broadcast %cst_1 : f32 to vector<16x128xf32>
    %4 = arith.subf %3, %0 : vector<16x128xf32>
    %5 = arith.minimumf %2, %4 : vector<16x128xf32>
    %cst_2 = arith.constant 0.000000e+00 : f32
    %6 = vector.broadcast %cst_2 : f32 to vector<16x128xf32>
    %7 = arith.cmpf ogt, %5, %6 : vector<16x128xf32>
    %cst_3 = arith.constant 0.000000e+00 : f32
    %8 = vector.broadcast %cst_3 : f32 to vector<16x128xf32>
    %9 = arith.select %7, %5, %8 : vector<16x128xi1>, vector<16x128xf32>
    %c0_4 = arith.constant 0 : index
    %c0_5 = arith.constant 0 : index
    %10 = vector.load %arg2[%c0_4, %c0_5] : memref<16x128xf32, #tpu.memory_space<vmem>>, vector<16x128xf32>
    tpu.vector_store %arg2[%c0_4, %c0_5], %9 {strides = array<i32>} : memref<16x128xf32, #tpu.memory_space<vmem>>, vector<16x128xf32>,
    return
  }
  func.func @transform_0(%arg0: i32) -> (i32, i32) {
    %c0_i32 = arith.constant 0 : i32
    %c0_i32_0 = arith.constant 0 : i32
    return %arg0, %c0_i32 : i32, i32
  }
  func.func @transform_1(%arg0: i32) -> (i32, i32) {
    %c0_i32 = arith.constant 0 : i32
    %c0_i32_0 = arith.constant 0 : i32
    return %arg0, %c0_i32 : i32, i32
  }
}

</mosaic_0001>

<llo_original>
// kernel: tpu_custom_call.1
$region0: #{tpu_custom_call.1}
  #allocation0 [shape = 'u32[]', space=smem, size = 0x4, offset = 0x4, fixed_abs, tag = 'smem constant byte address 0x4 - core index']
  #allocation1 [shape = 'u32[144,128]{1,0:T(1,128)}', space=vmem, size = 0x12000, scoped, tag = 'internal scratch']
  %s0 = inlined_call_operand.hbm [shape: f32[16,128], index: 0, kind: input, shape index: {}]
  %s1 = inlined_call_operand.hbm [shape: f32[16,128], index: 1, kind: output, shape index: {}]
  %s2 = sld [smem:[#allocation0]]
  $region18: #{tpu_custom_call.1} parent=0
    _
  %s4 = ssub.s32 1, %s2
  %s5 = scalar_select 0, %s4, %s2
  $region1: #{tpu_custom_call.1} parent=0
    #allocation2 [shape = 'u8[8192]{0}', space=vmem, size = 0x2000, scoped, tag = 'input window, operand 0, single buffered']
    #allocation3 [shape = 's32[1]{0}', space=sflag, size = 0x4, scoped, tag = 'scoped memory for tpu_custom_call.1']
    #allocation4 [shape = 's32[1]{0}', space=sflag, size = 0x4, scoped, tag = 'scoped memory for tpu_custom_call.1']
    #allocation5 [shape = 'u8[8192]{0}', space=vmem, size = 0x2000, scoped, tag = 'output window, operand 0, single buffered']
    %6 = vsyncpa [#allocation3], 0
    %7 = vsyncpa [#allocation4], 0
    // Predicated region
    $region2: #{tpu_custom_call.1} parent=1 // pred_check
      _
    $region3: #{tpu_custom_call.1} parent=1 // pred_check_branch
      %9 = sbr.rel (0) target = $region5
    $region4: #{tpu_custom_call.1} parent=1 // pred_region
      %s11 = ssub.s32 256, 256
      %12 = vsyncadd [#allocation3], %s11
      %s13 = sshll.u32 [#allocation2], 4
      %s14 = int_to_ptr.vmem [resolvable:$true] %s13
      %19 = dma.hbm_to_vmem [thread:$0]  %s0, 256, %s14, [#allocation3], 128, 128, 8
    $region5: #{tpu_custom_call.1} parent=1 // pred_fallthru
      _
    // Predicated region
    $region6: #{tpu_custom_call.1} parent=1 // pred_check
      _
    $region7: #{tpu_custom_call.1} parent=1 // pred_check_branch
      %21 = sbr.rel (0) target = $region9
    $region8: #{tpu_custom_call.1} parent=1 // pred_region
      %22 = dma.done [#allocation3], 256
    $region9: #{tpu_custom_call.1} parent=1 // pred_fallthru
      _
    %v23 = vld [vmem:[#allocation2] sm:$0xff]
    %v24 = vld [vmem:[#allocation2 + $0x8] sm:$0xff]
    %v25 = vadd.f32 %v23, 1.0
    %v26 = vadd.f32 %v24, 1.0
    %v27 = vsub.f32 1.0, %v23
    %v28 = vsub.f32 1.0, %v24
    %v29 = vmin.f32 %v25, %v27
    %v30 = vmin.f32 %v26, %v28
    %vm31 = vcmp.gt.f32.partialorder %v29, 0.0
    %vm32 = vcmp.gt.f32.partialorder %v30, 0.0
    %v33 = vsel %vm31, %v29, 0.0
    %v34 = vsel %vm32, %v30, 0.0
    %35 = vst [vmem:[#allocation5] sm:$0xff] %v33
    %36 = vst [vmem:[#allocation5 + $0x8] sm:$0xff] %v34
    // Predicated region
    $region10: #{tpu_custom_call.1} parent=1 // pred_check
      _
    $region11: #{tpu_custom_call.1} parent=1 // pred_check_branch
      %38 = sbr.rel (0) target = $region13
    $region12: #{tpu_custom_call.1} parent=1 // pred_region
      %s40 = ssub.s32 256, 256
      %41 = vsyncadd [#allocation4], %s40
      %s42 = sshll.u32 [#allocation5], 4
      %s43 = int_to_ptr.vmem [resolvable:$true] %s42
      %48 = dma.vmem_to_hbm [thread:$0]  %s43, 256, %s1, [#allocation4], 128, 128, 8
    $region13: #{tpu_custom_call.1} parent=1 // pred_fallthru
      _
    // Predicated region
    $region14: #{tpu_custom_call.1} parent=1 // pred_check
      _
    $region15: #{tpu_custom_call.1} parent=1 // pred_check_branch
      %50 = sbr.rel (0) target = $region17
    $region16: #{tpu_custom_call.1} parent=1 // pred_region
      %51 = dma.done [#allocation4], 256
    $region17: #{tpu_custom_call.1} parent=1 // pred_fallthru
      _
    %52 = vsyncpa [#allocation3], 1
    %53 = vsyncpa [#allocation4], 1

</llo_original>
